<compile_context>
chip_gen: v5e
topology: v5e:2x2
jax: 0.10.0
libtpu: 0.0.40
codegen_flags: <defaults>
</compile_context>

<pallas_src>
import math

import jax
import jax.numpy as jnp
import numpy as np
from jax.experimental import pallas as pl
from jax.experimental.pallas import tpu as pltpu


def _pe_kernel(tab_ref, o_ref):
    """tab_ref: (2, Dp) f32 resident table; row 0 = 1/denominator, row 1 = phase.
    o_ref: (TILE_S, Dp) output tile."""
    tile_s, _ = o_ref.shape
    row0 = pl.program_id(0) * tile_s                      # global row offset

    inv_freq = tab_ref[0:1, :]                            # (1, Dp)
    phase = tab_ref[1:2, :]                               # (1, Dp): 0 (even) / pi/2 (odd)

    # (TILE_S, 1) position column; int add + convert happen once per row only.
    pos = (jax.lax.broadcasted_iota(jnp.int32, (tile_s, 1), 0) + row0
           ).astype(jnp.float32)

    angle = pos * inv_freq + phase                        # broadcast to (TILE_S, Dp)
    o_ref[...] = jnp.sin(angle).astype(o_ref.dtype)       # single EUP op per element


def _pick_tile_s(seq_len: int, d_model_padded: int, requested=None) -> int:
    """Rows per output block: ~4 MiB of f32, sublane(8)-aligned, and >= 4 grid
    steps when seq_len >= 32 so v7x's two TensorCores both get work."""
    if requested is not None:
        tile = min(int(requested), seq_len)
    else:
        tile = min(seq_len, max(8, (4 * 1024 * 1024) // (4 * d_model_padded)))
        if seq_len >= 32:
            tile = min(tile, max(8, (seq_len // 4 // 8) * 8))
    if tile >= seq_len:
        return seq_len
    tile = (tile // 8) * 8  # partial-extent row blocks must be multiples of 8
    return seq_len if tile < 8 else tile


def _host_freq_phase_table(d_model: int, d_pad: int) -> np.ndarray:
    """(2, d_pad) f32: row 0 = 1/10000**(2k/D) repeated per sin/cos pair (f64->f32),
    row 1 = per-column phase (0 for even/sin columns, pi/2 for odd/cos columns)."""
    even_i = np.arange(0, d_model, 2, dtype=np.float64)
    inv_denom = 1.0 / np.power(10000.0, even_i / float(d_model))      # f64, exact-ish
    inv_freq_row = np.repeat(inv_denom, 2).astype(np.float32)          # (D,)
    phase_row = np.tile(np.array([0.0, math.pi / 2], dtype=np.float32),
                        d_model // 2)                                  # (D,)
    tab = np.stack([inv_freq_row, phase_row]).astype(np.float32)       # (2, D)
    if d_pad != d_model:
        tab = np.pad(tab, ((0, 0), (0, d_pad - d_model)))
    return tab


def positional_encoding(d_model: int,
                        max_sequence_length: int,
                        *,
                        tile_s: int | None = None,
                        dtype=jnp.float32) -> jax.Array:
    """Returns the (max_sequence_length, d_model) sinusoidal PE table."""
    assert d_model % 2 == 0, "d_model must be even (same as the torch module)"
    S, D = max_sequence_length, d_model
    D_pad = ((D + 127) // 128) * 128                    # lane-dense output slab
    ts = _pick_tile_s(S, D_pad, tile_s)

    tab = jnp.asarray(_host_freq_phase_table(D, D_pad))

    out = pl.pallas_call(
        _pe_kernel,
        out_shape=jax.ShapeDtypeStruct((S, D_pad), dtype),
        grid=(pl.cdiv(S, ts),),
        in_specs=[pl.BlockSpec((2, D_pad), lambda i: (0, 0))],   # resident constants
        out_specs=pl.BlockSpec((ts, D_pad), lambda i: (i, 0)),
        compiler_params=pltpu.CompilerParams(
            dimension_semantics=("parallel",)),  # shard row grid across TCs (v7x)
    )(tab)

    return out if D_pad == D else out[:, :D]


def _reference(d_model: int, max_sequence_length: int) -> np.ndarray:
    even_i = np.arange(0, d_model, 2, dtype=np.float32)
    denominator = np.power(10000.0, even_i / d_model).astype(np.float32)
    position = np.arange(max_sequence_length, dtype=np.float32).reshape(-1, 1)
    even_pe = np.sin(position / denominator)
    odd_pe = np.cos(position / denominator)
    stacked = np.stack([even_pe, odd_pe], axis=2)
    return stacked.reshape(max_sequence_length, d_model).astype(np.float32)


if __name__ == "__main__":
    # The module takes no tensor inputs; key created only for interface parity.
    _ = jax.random.PRNGKey(0)

    # Small but lane-dense demo: D is a multiple of 128 (unmasked stores), and
    # tile_s=16 gives a 4-step row grid so the program_id offset path and the
    # resident-constant BlockSpec are both exercised.
    d_model = 128
    max_sequence_length = 64

    pe = positional_encoding(d_model, max_sequence_length, tile_s=16)
    pe = jax.block_until_ready(pe)

    ref = _reference(d_model, max_sequence_length)
    # Frequencies now match torch's pow(10000, 2k/D) (host f64 -> f32), so the
    # only deviations are few-ulp: the f32 rounding of (angle + pi/2) on odd
    # columns and sin-implementation ulps.  5e-5 abs is comfortably above the
    # worst case at these angles while far tighter than the old 1e-4.
    np.testing.assert_allclose(np.asarray(pe), ref, rtol=1e-5, atol=5e-5)

    print("KERNEL_OK")
</pallas_src>

<mosaic_0001>
module attributes {stable_mosaic.version = 11 : i64} {
  func.func @_pe_kernel(%arg0: i32, %arg1: memref<2x128xf32, #tpu.memory_space<vmem>>, %arg2: memref<16x128xf32, #tpu.memory_space<vmem>>) attributes {dimension_semantics = [#tpu.dimension_semantics<parallel>], iteration_bounds = array<i64: 4>, scalar_prefetch = 0 : i64, scratch_operands = 0 : i64, tpu.core_type = #tpu.core_type<tc>, window_params = [{pipeline_mode = #tpu.pipeline_mode<synchronous>, transform_indices = @transform_0, window_bounds = array<i64: 2, 128>}, {transform_indices = @transform_1, window_bounds = array<i64: 16, 128>}]} {
    %c16_i32 = arith.constant 16 : i32
    %0 = arith.muli %arg0, %c16_i32 : i32
    %c0 = arith.constant 0 : index
    %c0_0 = arith.constant 0 : index
    %1 = vector.load %arg1[%c0, %c0_0] : memref<2x128xf32, #tpu.memory_space<vmem>>, vector<1x128xf32>
    %c1 = arith.constant 1 : index
    %c0_1 = arith.constant 0 : index
    %2 = vector.load %arg1[%c1, %c0_1] : memref<2x128xf32, #tpu.memory_space<vmem>>, vector<1x128xf32>
    %3 = tpu.iota {dimensions = array<i32: 0>} : vector<16x1xi32>
    %4 = vector.broadcast %0 : i32 to vector<16x1xi32>
    %5 = arith.addi %3, %4 : vector<16x1xi32>
    %6 = arith.sitofp %5 : vector<16x1xi32> to vector<16x1xf32>
    %7 = vector.broadcast %6 : vector<16x1xf32> to vector<16x128xf32>
    %8 = vector.broadcast %1 : vector<1x128xf32> to vector<16x128xf32>
    %9 = arith.mulf %7, %8 : vector<16x128xf32>
    %10 = vector.broadcast %2 : vector<1x128xf32> to vector<16x128xf32>
    %11 = arith.addf %9, %10 : vector<16x128xf32>
    %12 = math.sin %11 : vector<16x128xf32>
    %c0_2 = arith.constant 0 : index
    %c0_3 = arith.constant 0 : index
    %13 = vector.load %arg2[%c0_2, %c0_3] : memref<16x128xf32, #tpu.memory_space<vmem>>, vector<16x128xf32>
    tpu.vector_store %arg2[%c0_2, %c0_3], %12 {strides = array<i32>} : memref<16x128xf32, #tpu.memory_space<vmem>>, vector<16x128xf32>,
    return
  }
  func.func @transform_0(%arg0: i32) -> (i32, i32) {
    %c0_i32 = arith.constant 0 : i32
    %c0_i32_0 = arith.constant 0 : i32
    %c0_i32_1 = arith.constant 0 : i32
    return %c0_i32, %c0_i32_0 : i32, i32
  }
  func.func @transform_1(%arg0: i32) -> (i32, i32) {
    %c0_i32 = arith.constant 0 : i32
    %c0_i32_0 = arith.constant 0 : i32
    return %arg0, %c0_i32 : i32, i32
  }
}

</mosaic_0001>

<llo_original>
// kernel: tpu_custom_call.1
$region0: #{tpu_custom_call.1}
  #allocation0 [shape = 'u32[]', space=smem, size = 0x4, offset = 0x4, fixed_abs, tag = 'smem constant byte address 0x4 - core index']
  #allocation1 [shape = 'u32[72,128]{1,0:T(1,128)}', space=vmem, size = 0x9000, scoped, tag = 'internal scratch']
  %s0 = inlined_call_operand.hbm [shape: f32[2,128], index: 0, kind: input, shape index: {}]
  %s1 = inlined_call_operand.hbm [shape: f32[64,128], index: 1, kind: output, shape index: {}]
  %s2 = sld [smem:[#allocation0]]
  $region41: #{tpu_custom_call.1} parent=0
    _
  %s4 = ssub.s32 1, %s2
  %s5 = scalar_select 0, %s4, %s2
  $region1: #{tpu_custom_call.1} parent=0
    #allocation2 [shape = 'u8[1024]{0}', space=vmem, size = 0x400, scoped, tag = 'input window, operand 0, single buffered']
    #allocation3 [shape = 's32[2]{0}', space=sflag, size = 0x8, scoped, tag = 'scoped memory for tpu_custom_call.1']
    #allocation4 [shape = 's32[2]{0}', space=sflag, size = 0x8, scoped, tag = 'scoped memory for tpu_custom_call.1']
    #allocation5 [shape = 'u8[16384]{0}', space=vmem, size = 0x4000, scoped, tag = 'output window, operand 0']
    %6 = vsyncpa [#allocation3], 0
    %7 = vsyncpa [#allocation4], 0
    %s8 = scalar_lea.sflag [#allocation4], 1
    %9 = vsyncpa %s8, 0
    loop: start=0, step=1, limit=6
    $region2: #{tpu_custom_call.1} parent=1 // loop_pre_header
      _
    $region3: #{tpu_custom_call.1} parent=1 // loop_header
      %s11 = sphi 0, %s15
      %p12 = scmp.ge.s32.totalorder %s11, 6
      %s19 = sphi 0, %s19
      %s21 = sphi 0, %s19
      %s22 = sphi 0, %s21
      %s36 = sphi 0, %s22
      %s42 = sphi 0, %s44
      %s45 = sphi 0, %s42
      %s46 = sphi 0, %s45
      %s62 = sphi 0, %s46
    $region4: #{tpu_custom_call.1} parent=1 // loop_header_branch
      %14 = sbr.rel (%p12) target = $region8
    $region5: #{tpu_custom_call.1} parent=1 // loop_body
      %s16 = ssub.s32 %s11, 1
      %s17 = ssub.s32 %s11, 2
      %s18 = sadd.s32 %s11, 1
      %s20 = sadd.s32 %s19, 1
      %p23 = scmp.eq.s32.totalorder %s11, 3
      %p24 = scmp.ne.s32.totalorder %s19, %s21
      %p25 = scmp.eq.s32.totalorder %s11, 0
      %p26 = por %p24, %p25
      %p27 = scmp.ne.s32.totalorder %s19, %s21
      %p28 = scmp.eq.s32.totalorder %s16, 3
      %p29 = por %p27, %p28
      %p30 = scmp.ne.s32.totalorder %s21, %s22
      %p31 = scmp.eq.s32.totalorder %s16, 0
      %p32 = por %p30, %p31
      %p33 = scmp.ne.s32.totalorder %s21, %s22
      %p34 = scmp.eq.s32.totalorder %s17, 3
      %p35 = por %p33, %p34
      %p37 = scmp.ne.s32.totalorder %s22, %s36
      %p38 = scmp.eq.s32.totalorder %s17, 0
      %p39 = por %p37, %p38
      %s40 = ssub.s32 %s11, %s18
      %p41 = scmp.eq.s32.totalorder %s40, 0
      %s43 = sadd.s32 %s42, 1
      %s44 = scalar_select %p41, %s42, %s43
      %p47 = pneg %p41
      %p48 = scmp.eq.s32.totalorder %s11, 3
      %p49 = por %p47, %p48
      %p50 = scmp.ne.s32.totalorder %s42, %s45
      %p51 = scmp.eq.s32.totalorder %s11, 0
      %p52 = por %p50, %p51
      %p53 = scmp.ne.s32.totalorder %s42, %s45
      %p54 = scmp.eq.s32.totalorder %s16, 3
      %p55 = por %p53, %p54
      %p56 = scmp.ne.s32.totalorder %s45, %s46
      %p57 = scmp.eq.s32.totalorder %s16, 0
      %p58 = por %p56, %p57
      %p59 = scmp.ne.s32.totalorder %s45, %s46
      %p60 = scmp.eq.s32.totalorder %s17, 3
      %p61 = por %p59, %p60
      %p63 = scmp.ne.s32.totalorder %s46, %s62
      %p64 = scmp.eq.s32.totalorder %s17, 0
      %p65 = por %p63, %p64
      %p66 = scmp.le.s32.totalorder 1, %s11
      %p67 = scmp.lt.s32.totalorder %s11, 5
      %p68 = pnand %p66, %p67
      %p69 = pneg %p68
      // Predicated region
      $region9: #{tpu_custom_call.1} parent=5 // pred_check
        _
      $region10: #{tpu_custom_call.1} parent=5 // pred_check_branch
        %71 = sbr.rel (%p68) target = $region12
      $region11: #{tpu_custom_call.1} parent=5 // pred_region
        %s72 = ssub.s32 %s11, 1
        // Predicated region
        $region13: #{tpu_custom_call.1} parent=11 // pred_check
          %p73 = pneg %p32
        $region14: #{tpu_custom_call.1} parent=11 // pred_check_branch
          %75 = sbr.rel (%p73) target = $region16
        $region15: #{tpu_custom_call.1} parent=11 // pred_region
          %77 = vsyncadd [#allocation3], 0
          %s79 = sshll.u32 %s0, 4
          %s80 = int_to_ptr.hbm [resolvable:$true] %s79
          %s81 = sshll.u32 [#allocation2], 4
          %s82 = int_to_ptr.vmem [resolvable:$true] %s81
          %84 = dma.hbm_to_vmem [thread:$0]  %s80, 32, %s82, [#allocation3]
        $region16: #{tpu_custom_call.1} parent=11 // pred_fallthru
          _
      $region12: #{tpu_custom_call.1} parent=5 // pred_fallthru
        _
      %p85 = scmp.lt.s32.totalorder %s11, 4
      // Predicated region
      $region17: #{tpu_custom_call.1} parent=5 // pred_check
        %p86 = pneg %p85
      $region18: #{tpu_custom_call.1} parent=5 // pred_check_branch
        %88 = sbr.rel (%p86) target = $region20
      $region19: #{tpu_custom_call.1} parent=5 // pred_region
        _
      $region20: #{tpu_custom_call.1} parent=5 // pred_fallthru
        _
      %p89 = scmp.le.s32.totalorder 1, %s11
      %p90 = scmp.lt.s32.totalorder %s11, 5
      %p91 = pnand %p89, %p90
      %p92 = pneg %p91
      // Predicated region
      $region21: #{tpu_custom_call.1} parent=5 // pred_check
        _
      $region22: #{tpu_custom_call.1} parent=5 // pred_check_branch
        %94 = sbr.rel (%p91) target = $region24
      $region23: #{tpu_custom_call.1} parent=5 // pred_region
        %s95 = ssub.s32 %s11, 1
        // Predicated region
        $region25: #{tpu_custom_call.1} parent=23 // pred_check
          %p96 = pneg %p32
        $region26: #{tpu_custom_call.1} parent=23 // pred_check_branch
          %98 = sbr.rel (%p96) target = $region28
        $region27: #{tpu_custom_call.1} parent=23 // pred_region
          %100 = dma.done [#allocation3], 32
        $region28: #{tpu_custom_call.1} parent=23 // pred_fallthru
          _
        %p101 = pneg %p32
        %p102 = pneg %p29
        %p103 = pneg %p58
        %p104 = pneg %p55
        %s105 = sand.u32 %s45, 1
        %s106 = scalar_lea.sflag [#allocation4], %s105
        %s107 = sand.u32 %s45, 1
        %s108 = smul.addr %s107, 16
        %s109 = scalar_lea.vmem [#allocation5], %s108
        %s110 = smul.u32 2, %s16
        %s111 = smul.u32 %s16, 16
        %v112 = vld [vmem:[#allocation2] sm:$0x1]
        %v113 = vld [vmem:[#allocation2 + $0x1] sm:$0x1]
        %v114 = vlaneseq
        %v115 = vshrl.u32 %v114, 7
        %v116 = vadd.s32 %v115, 8
        %v117 = vstv %s111
        %v118 = vadd.s32 %v115, %v117
        %v119 = vadd.s32 %v116, %v117
        %v120 = vcvt.s32.f32 %v118
        %v121 = vcvt.s32.f32 %v119
        %v122 = vperm.slane %v112, 0
        %v123 = vmul.f32 %v120, %v122
        %v124 = vmul.f32 %v121, %v122
        %v125 = vperm.slane %v113, 0
        %v126 = vadd.f32 %v123, %v125
        %v127 = vadd.f32 %v124, %v125
        %v128 = vand.u32 2147483647, %v126
        %vm129 = vcmp.le.f32.partialorder %v128, 0.7853982
        %vm130 = vcmp.lt.s32.totalorder %v126, 0
        %v131 = vand.u32 %v126, 2139095040
        %v132 = vshrl.u32 %v131, 23
        %v133 = vsub.s32 %v132, 127
        %v134 = vand.u32 2147483647, %v126
        %v135 = vand.u32 %v134, 8388607
        %v136 = vor.u32 %v135, 8388608
        %v137 = vsub.s32 0, %v136
        %v138 = vadd.s32 %v133, 1
        %vm139 = vcmp.gt.s32.totalorder %v138, 0
        %v140 = vsel %vm139, %v138, 0
        %v141 = vshrl.u32 %v140, 5
        %v142 = vand.u32 %v140, 31
        %v143 = vsub.s32 32, %v142
        %v144 = vshrl.u32 683565275, %v143
        %v145 = vshll.u32 683565275, %v142
        %v146 = vshrl.u32 2475754826, %v143
        %v147 = vor.u32 %v145, %v146
        %v148 = vshll.u32 2475754826, %v142
        %v149 = vshrl.u32 2131351028, %v143
        %v150 = vor.u32 %v148, %v149
        %v151 = vshll.u32 2131351028, %v142
        %v152 = vshrl.u32 2102212464, %v143
        %v153 = vor.u32 %v151, %v152
        %v154 = vshll.u32 2102212464, %v142
        %v155 = vshrl.u32 920167782, %v143
        %v156 = vor.u32 %v154, %v155
        %v157 = vshll.u32 920167782, %v142
        %v158 = vshrl.u32 1326507024, %v143
        %v159 = vor.u32 %v157, %v158
        %vm160 = vcmp.lt.s32.totalorder %v141, 1
        %vm161 = vcmp.lt.s32.totalorder %v141, 2
        %vm162 = vcmp.lt.s32.totalorder %v141, 3
        %vm163 = vcmp.lt.s32.totalorder %v141, 4
        %v164 = vsel %vm160, %v144, %v147
        %v165 = vsel %vm163, %v153, 2102212464
        %v166 = vsel %vm162, %v150, %v165
        %v167 = vsel %vm161, %v164, %v166
        %v168 = vsel %vm160, %v147, %v150
        %v169 = vsel %vm163, %v156, 920167782
        %v170 = vsel %vm162, %v153, %v169
        %v171 = vsel %vm161, %v168, %v170
        %v172 = vsel %vm160, %v150, %v153
        %v173 = vsel %vm163, %v159, 1326507024
        %v174 = vsel %vm162, %v156, %v173
        %v175 = vsel %vm161, %v172, %v174
        %v176 = vshll.u32 %v136, 8
        %v177 = vand.u32 %v176, 65535
        %v178 = vshrl.u32 %v176, 16
        %v179 = vand.u32 %v175, 65535
        %v180 = vshrl.u32 %v175, 16
        %v181 = vmul.u32 %v177, %v179
        %v182 = vmul.u32 %v177, %v180
        %v183 = vmul.u32 %v178, %v179
        %v184 = vmul.u32 %v178, %v180
        %v185 = vshll.u32 %v182, 16
        %v186 = vshrl.u32 %v182, 16
        %v187 = vshll.u32 %v183, 16
        %v188 = vshrl.u32 %v183, 16
        %vm189 = vc.u32 %v181, %v185
        %v190 = vsel %vm189, 1, 0
        %v191 = vadd.s32 %v181, %v185
        %v192 = vadd.s32 %v184, %v190
        %vm193 = vc.u32 %v191, %v187
        %v194 = vsel %vm193, 1, 0
        %v195 = vadd.s32 %v191, %v187
        %v196 = vadd.s32 %v192, %v194
        %v197 = vadd.s32 %v196, %v186
        %v198 = vadd.s32 %v197, %v188
        %v199 = vand.u32 %v176, 65535
        %v200 = vshrl.u32 %v176, 16
        %v201 = vand.u32 %v171, 65535
        %v202 = vshrl.u32 %v171, 16
        %v203 = vmul.u32 %v199, %v201
        %v204 = vmul.u32 %v199, %v202
        %v205 = vmul.u32 %v200, %v201
        %v206 = vmul.u32 %v200, %v202
        %v207 = vshll.u32 %v204, 16
        %v208 = vshrl.u32 %v204, 16
        %v209 = vshll.u32 %v205, 16
        %v210 = vshrl.u32 %v205, 16
        %vm211 = vc.u32 %v203, %v207
        %v212 = vsel %vm211, 1, 0
        %v213 = vadd.s32 %v203, %v207
        %v214 = vadd.s32 %v206, %v212
        %vm215 = vc.u32 %v213, %v209
        %v216 = vsel %vm215, 1, 0
        %v217 = vadd.s32 %v213, %v209
        %v218 = vadd.s32 %v214, %v216
        %v219 = vadd.s32 %v218, %v208
        %v220 = vadd.s32 %v219, %v210
        %v221 = vmul.u32 %v176, %v167
        %v222 = vadd.s32 %v198, %v217
        %vm223 = vc.u32 %v198, %v217
        %v224 = vadd.s32 %v220, 1
        %v225 = vsel %vm223, %v224, %v220
        %v226 = vadd.s32 %v221, %v225
        %v227 = vadd.s32 %v226, 536870912
        %v228 = vshrl.u32 %v227, 30
        %v229 = vshll.u32 %v228, 30
        %v230 = vsub.s32 %v226, %v229
        %vm231 = vcmp.lt.s32.totalorder %v230, 0
        %v232 = vsub.s32 0, %v230
        %v233 = vsel %vm231, %v232, %v230
        %v234 = vclz %v233
        %v235 = vsub.s32 %v234, 2
        %vm236 = vcmp.gt.s32.totalorder 0, %v235
        %v237 = vsel %vm236, 0, %v235
        %v238 = vsub.s32 32, %v237
        %v239 = vshll.u32 %v230, %v237
        %v240 = vshrl.u32 %v222, %v238
        %v241 = vor.u32 %v239, %v240
        %v242 = vsub.s32 4294967266, %v237
        %v243 = vadd.s32 %v242, 127
        %v244 = vshll.u32 %v243, 23
        %v245 = vor.u32 4788187, %v244
        %v246 = vand.u32 2147483647, %v245
        %v248 = vcvt.s32.f32 %v241
        %v249 = vmul.f32 %v248, %v246
        %v250 = vxor.u32 %v249, 2147483648
        %v251 = vsel %vm130, %v250, %v249
        %v252 = vsub.s32 4, %v228
        %v253 = vsel %vm130, %v252, %v228
        %v254 = vsel %vm129, %v126, %v251
        %v255 = vsel %vm129, 0, %v253
        %v256 = vmul.f32 %v254, %v254
        %v257 = vmul.f32 %v256, -0.001358992
        %v258 = vadd.f32 %v257, 0.041655596
        %v259 = vmul.f32 %v256, %v258
        %v260 = vadd.f32 %v259, -0.4999988
        %v261 = vmul.f32 %v256, %v260
        %v262 = vadd.f32 1.0, %v261
        %v263 = vmul.f32 %v254, %v254
        %v264 = vmul.f32 %v263, -0.00019511016
        %v265 = vadd.f32 %v264, 0.008332121
        %v266 = vmul.f32 %v263, %v265
        %v267 = vadd.f32 %v266, -0.16666654
        %v268 = vmul.f32 %v263, %v267
        %v269 = vadd.f32 %v268, 1.0
        %v270 = vmul.f32 %v269, %v254
        %vm271 = vweird.f32 %v126
        %v272 = vadd.s32 %v255, 3
        %v273 = vand.u32 %v272, 3
        %vm274 = vcmp.lt.s32.totalorder %v273, 2
        %vm275 = vcmp.eq.s32.totalorder %v273, 0
        %v276 = vxor.u32 %v270, 2147483648
        %v277 = vsel %vm275, %v262, %v276
        %vm278 = vcmp.eq.s32.totalorder %v273, 2
        %v279 = vxor.u32 %v262, 2147483648
        %v280 = vsel %vm278, %v279, %v270
        %v281 = vsel %vm274, %v277, %v280
        %v282 = vsel %vm271, nan, %v281
        %v283 = vand.u32 2147483647, %v127
        %vm284 = vcmp.le.f32.partialorder %v283, 0.7853982
        %vm285 = vcmp.lt.s32.totalorder %v127, 0
        %v286 = vand.u32 %v127, 2139095040
        %v287 = vshrl.u32 %v286, 23
        %v288 = vsub.s32 %v287, 127
        %v289 = vand.u32 2147483647, %v127
        %v290 = vand.u32 %v289, 8388607
        %v291 = vor.u32 %v290, 8388608
        %v292 = vsub.s32 0, %v291
        %v293 = vadd.s32 %v288, 1
        %vm294 = vcmp.gt.s32.totalorder %v293, 0
        %v295 = vsel %vm294, %v293, 0
        %v296 = vshrl.u32 %v295, 5
        %v297 = vand.u32 %v295, 31
        %v298 = vsub.s32 32, %v297
        %v299 = vshrl.u32 683565275, %v298
        %v300 = vshll.u32 683565275, %v297
        %v301 = vshrl.u32 2475754826, %v298
        %v302 = vor.u32 %v300, %v301
        %v303 = vshll.u32 2475754826, %v297
        %v304 = vshrl.u32 2131351028, %v298
        %v305 = vor.u32 %v303, %v304
        %v306 = vshll.u32 2131351028, %v297
        %v307 = vshrl.u32 2102212464, %v298
        %v308 = vor.u32 %v306, %v307
        %v309 = vshll.u32 2102212464, %v297
        %v310 = vshrl.u32 920167782, %v298
        %v311 = vor.u32 %v309, %v310
        %v312 = vshll.u32 920167782, %v297
        %v313 = vshrl.u32 1326507024, %v298
        %v314 = vor.u32 %v312, %v313
        %vm315 = vcmp.lt.s32.totalorder %v296, 1
        %vm316 = vcmp.lt.s32.totalorder %v296, 2
        %vm317 = vcmp.lt.s32.totalorder %v296, 3
        %vm318 = vcmp.lt.s32.totalorder %v296, 4
        %v319 = vsel %vm315, %v299, %v302
        %v320 = vsel %vm318, %v308, 2102212464
        %v321 = vsel %vm317, %v305, %v320
        %v322 = vsel %vm316, %v319, %v321
        %v323 = vsel %vm315, %v302, %v305
        %v324 = vsel %vm318, %v311, 920167782
        %v325 = vsel %vm317, %v308, %v324
        %v326 = vsel %vm316, %v323, %v325
        %v327 = vsel %vm315, %v305, %v308
        %v328 = vsel %vm318, %v314, 1326507024
        %v329 = vsel %vm317, %v311, %v328
        %v330 = vsel %vm316, %v327, %v329
        %v331 = vshll.u32 %v291, 8
        %v332 = vand.u32 %v331, 65535
        %v333 = vshrl.u32 %v331, 16
        %v334 = vand.u32 %v330, 65535
        %v335 = vshrl.u32 %v330, 16
        %v336 = vmul.u32 %v332, %v334
        %v337 = vmul.u32 %v332, %v335
        %v338 = vmul.u32 %v333, %v334
        %v339 = vmul.u32 %v333, %v335
        %v340 = vshll.u32 %v337, 16
        %v341 = vshrl.u32 %v337, 16
        %v342 = vshll.u32 %v338, 16
        %v343 = vshrl.u32 %v338, 16
        %vm344 = vc.u32 %v336, %v340
        %v345 = vsel %vm344, 1, 0
        %v346 = vadd.s32 %v336, %v340
        %v347 = vadd.s32 %v339, %v345
        %vm348 = vc.u32 %v346, %v342
        %v349 = vsel %vm348, 1, 0
        %v350 = vadd.s32 %v346, %v342
        %v351 = vadd.s32 %v347, %v349
        %v352 = vadd.s32 %v351, %v341
        %v353 = vadd.s32 %v352, %v343
        %v354 = vand.u32 %v331, 65535
        %v355 = vshrl.u32 %v331, 16
        %v356 = vand.u32 %v326, 65535
        %v357 = vshrl.u32 %v326, 16
        %v358 = vmul.u32 %v354, %v356
        %v359 = vmul.u32 %v354, %v357
        %v360 = vmul.u32 %v355, %v356
        %v361 = vmul.u32 %v355, %v357
        %v362 = vshll.u32 %v359, 16
        %v363 = vshrl.u32 %v359, 16
        %v364 = vshll.u32 %v360, 16
        %v365 = vshrl.u32 %v360, 16
        %vm366 = vc.u32 %v358, %v362
        %v367 = vsel %vm366, 1, 0
        %v368 = vadd.s32 %v358, %v362
        %v369 = vadd.s32 %v361, %v367
        %vm370 = vc.u32 %v368, %v364
        %v371 = vsel %vm370, 1, 0
        %v372 = vadd.s32 %v368, %v364
        %v373 = vadd.s32 %v369, %v371
        %v374 = vadd.s32 %v373, %v363
        %v375 = vadd.s32 %v374, %v365
        %v376 = vmul.u32 %v331, %v322
        %v377 = vadd.s32 %v353, %v372
        %vm378 = vc.u32 %v353, %v372
        %v379 = vadd.s32 %v375, 1
        %v380 = vsel %vm378, %v379, %v375
        %v381 = vadd.s32 %v376, %v380
        %v382 = vadd.s32 %v381, 536870912
        %v383 = vshrl.u32 %v382, 30
        %v384 = vshll.u32 %v383, 30
        %v385 = vsub.s32 %v381, %v384
        %vm386 = vcmp.lt.s32.totalorder %v385, 0
        %v387 = vsub.s32 0, %v385
        %v388 = vsel %vm386, %v387, %v385
        %v389 = vclz %v388
        %v390 = vsub.s32 %v389, 2
        %vm391 = vcmp.gt.s32.totalorder 0, %v390
        %v392 = vsel %vm391, 0, %v390
        %v393 = vsub.s32 32, %v392
        %v394 = vshll.u32 %v385, %v392
        %v395 = vshrl.u32 %v377, %v393
        %v396 = vor.u32 %v394, %v395
        %v397 = vsub.s32 4294967266, %v392
        %v398 = vadd.s32 %v397, 127
        %v399 = vshll.u32 %v398, 23
        %v400 = vor.u32 4788187, %v399
        %v401 = vand.u32 2147483647, %v400
        %v403 = vcvt.s32.f32 %v396
        %v404 = vmul.f32 %v403, %v401
        %v405 = vxor.u32 %v404, 2147483648
        %v406 = vsel %vm285, %v405, %v404
        %v407 = vsub.s32 4, %v383
        %v408 = vsel %vm285, %v407, %v383
        %v409 = vsel %vm284, %v127, %v406
        %v410 = vsel %vm284, 0, %v408
        %v411 = vmul.f32 %v409, %v409
        %v412 = vmul.f32 %v411, -0.001358992
        %v413 = vadd.f32 %v412, 0.041655596
        %v414 = vmul.f32 %v411, %v413
        %v415 = vadd.f32 %v414, -0.4999988
        %v416 = vmul.f32 %v411, %v415
        %v417 = vadd.f32 1.0, %v416
        %v418 = vmul.f32 %v409, %v409
        %v419 = vmul.f32 %v418, -0.00019511016
        %v420 = vadd.f32 %v419, 0.008332121
        %v421 = vmul.f32 %v418, %v420
        %v422 = vadd.f32 %v421, -0.16666654
        %v423 = vmul.f32 %v418, %v422
        %v424 = vadd.f32 %v423, 1.0
        %v425 = vmul.f32 %v424, %v409
        %vm426 = vweird.f32 %v127
        %v427 = vadd.s32 %v410, 3
        %v428 = vand.u32 %v427, 3
        %vm429 = vcmp.lt.s32.totalorder %v428, 2
        %vm430 = vcmp.eq.s32.totalorder %v428, 0
        %v431 = vxor.u32 %v425, 2147483648
        %v432 = vsel %vm430, %v417, %v431
        %vm433 = vcmp.eq.s32.totalorder %v428, 2
        %v434 = vxor.u32 %v417, 2147483648
        %v435 = vsel %vm433, %v434, %v425
        %v436 = vsel %vm429, %v432, %v435
        %v437 = vsel %vm426, nan, %v436
        %438 = vst [vmem:[%s109] sm:$0xff] %v282
        %439 = vst [vmem:[%s109 + $0x8] sm:$0xff] %v437
        %s440 = sand.u32 %s45, 1
        %s441 = scalar_lea.sflag [#allocation4], %s440
        %s442 = sand.u32 %s45, 1
        %s443 = smul.addr %s442, 16
        %s444 = scalar_lea.vmem [#allocation5], %s443
        // Predicated region
        $region29: #{tpu_custom_call.1} parent=23 // pred_check
          %p445 = pneg %p55
        $region30: #{tpu_custom_call.1} parent=23 // pred_check_branch
          %447 = sbr.rel (%p445) target = $region32
        $region31: #{tpu_custom_call.1} parent=23 // pred_region
          %s448 = smul.u32 2, %s16
          %450 = vsyncadd %s441, 0
          %s451 = smul.addr %s448, 8
          %s452 = scalar_lea.hbm %s1, %s451
          %s453 = sshll.u32 %s444, 4
          %s454 = int_to_ptr.vmem [resolvable:$true] %s453
          %s455 = sshll.u32 %s452, 4
          %s456 = int_to_ptr.hbm [resolvable:$true] %s455
          %461 = dma.vmem_to_hbm [thread:$0]  %s454, 256, %s456, %s441, 128, 128, 8
        $region32: #{tpu_custom_call.1} parent=23 // pred_fallthru
          _
      $region24: #{tpu_custom_call.1} parent=5 // pred_fallthru
        _
      %p462 = scmp.le.s32.totalorder 2, %s11
      // Predicated region
      $region33: #{tpu_custom_call.1} parent=5 // pred_check
        %p463 = pneg %p462
      $region34: #{tpu_custom_call.1} parent=5 // pred_check_branch
        %465 = sbr.rel (%p463) target = $region36
      $region35: #{tpu_custom_call.1} parent=5 // pred_region
        %s466 = ssub.s32 %s11, 2
        // Predicated region
        $region37: #{tpu_custom_call.1} parent=35 // pred_check
          %p467 = pneg %p61
        $region38: #{tpu_custom_call.1} parent=35 // pred_check_branch
          %469 = sbr.rel (%p467) target = $region40
        $region39: #{tpu_custom_call.1} parent=35 // pred_region
          %s470 = sand.u32 %s46, 1
          %s471 = scalar_lea.sflag [#allocation4], %s470
          %s472 = sand.u32 %s46, 1
          %s473 = smul.addr %s472, 16
          %s474 = scalar_lea.vmem [#allocation5], %s473
          %476 = dma.done %s471, 256
        $region40: #{tpu_custom_call.1} parent=35 // pred_fallthru
          _
      $region36: #{tpu_custom_call.1} parent=5 // pred_fallthru
        _
    $region6: #{tpu_custom_call.1} parent=1 // loop_footer
      %s15 = sadd.s32 1, %s11
    $region7: #{tpu_custom_call.1} parent=1 // loop_footer_branch
      %10 = sbr.rel target = $region3
    $region8: #{tpu_custom_call.1} parent=1 // loop_exit
      _
    %477 = vsyncpa [#allocation3], 1
    %s478 = scalar_lea.sflag [#allocation3], 1
    %479 = vsyncpa %s478, 1
    %480 = vsyncpa [#allocation4], 1
    %s481 = scalar_lea.sflag [#allocation4], 1
    %482 = vsyncpa %s481, 1

</llo_original>
